<compile_context>
chip_gen: v7x
topology: tpu7x:2x2x1
jax: 0.10.0
libtpu: 0.0.40
codegen_flags: <defaults>
</compile_context>

<pallas_src>
import jax
import jax.numpy as jnp
from jax import lax
from jax.experimental import pallas as pl
from jax.experimental.pallas import tpu as pltpu


def _round_up(v, m):
    return -(-v // m) * m


def _pick_tq(n_pad, batch, p_bytes):
    """Largest q-tile (multiple of 128 dividing n_pad) keeping the (n_pad, tq)
    energy/p slabs under ~8 MiB and giving >= 2 parallel programs (v7x: 2 TCs)."""
    cands = [d for d in range(128, n_pad + 1, 128) if n_pad % d == 0]
    if not cands:
        return n_pad
    budget = 8 * 2 ** 20
    for d in reversed(cands):
        if n_pad * d * (4 + p_bytes) <= budget and batch * (n_pad // d) >= 2:
            return d
    for d in reversed(cands):
        if n_pad * d * (4 + p_bytes) <= budget:
            return d
    return cands[0]


def nonlocal_block(x_nchw, wq, bq, wk, bk, wv, bv, gamma, *, use_bf16=True, tq=None):
    """x_nchw: (B, C, W, H) float32. Conv2d(k=1) weights given as (Cout, Cin)."""
    B, C, W, H = x_nchw.shape
    N = W * H
    n_pad = _round_up(N, 128)
    mm_dtype = jnp.bfloat16 if use_bf16 else jnp.float32
    p_bytes = 2 if use_bf16 else 4

    if tq is None:
        tq = _pick_tq(n_pad, B, p_bytes)
    assert n_pad % tq == 0 and (tq % 128 == 0 or tq == n_pad)
    n_q = n_pad // tq

    # Channel-major, lane-dense layout; pad N to a lane multiple; append a ones
    # row so every bias rides inside the MXU contraction.
    x_flat = x_nchw.reshape(B, C, N).astype(jnp.float32)
    if n_pad != N:
        x_flat = jnp.pad(x_flat, ((0, 0), (0, 0), (0, n_pad - N)))
    xa = jnp.concatenate(
        [x_flat, jnp.ones((B, 1, n_pad), jnp.float32)], axis=1)       # (B, C+1, Npad)

    wq = jnp.asarray(wq, jnp.float32)      # (Cq, C)
    wk = jnp.asarray(wk, jnp.float32)      # (Cq, C)
    wv = jnp.asarray(wv, jnp.float32)      # (C,  C)
    bq = jnp.asarray(bq, jnp.float32)      # (Cq,)
    bv = jnp.asarray(bv, jnp.float32)      # (C,)
    # bk (and bq^T bk) only add softmax-row-constant terms -> dropped (exact).

    m_qk = wq.T @ wk                       # (C, C)  folded Wq^T Wk
    r_row = bq @ wk                        # (C,)    bq^T Wk  (per-key softmax bias)

    # Fused, bias-augmented projection weight  proj = w_aug @ [x; 1]:
    #   rows [0,      C+1): [Wv | bv] and the ones-row generator [0 | 1]  -> v_aug
    #   rows [off_y, off_y+C+1): [Wq^T Wk | 0] and [bq^T Wk | 0]          -> y_aug
    # Section starts are 8-sublane aligned for any C (zero-cost proj slices).
    off_y = _round_up(C + 1, 8)
    R = off_y + C + 1

    w_aug = jnp.zeros((R, C + 1), jnp.float32)
    w_aug = w_aug.at[0:C, 0:C].set(wv)
    w_aug = w_aug.at[0:C, C].set(bv)
    w_aug = w_aug.at[C, C].set(1.0)                     # constant ones row of v_aug
    w_aug = w_aug.at[off_y:off_y + C, 0:C].set(m_qk)
    w_aug = w_aug.at[off_y + C, 0:C].set(r_row)

    gamma_r = jnp.asarray(gamma, jnp.float32).reshape(1, 1)

    def kernel(xa_ref, w_ref, g_ref, o_ref):
        qi = pl.program_id(1)
        q0 = pl.multiple_of(qi * tq, tq)

        xa_b = xa_ref[...]                                             # (C+1, Npad)
        qa = xa_ref[:, pl.ds(q0, tq)]                                  # (C+1, tq)

        # Single fused projection matmul; biases come from the ones row of xa.
        proj = jnp.dot(w_ref[...], xa_b,
                       preferred_element_type=jnp.float32)             # (R, Npad)
        v_aug = proj[0:C + 1, :]               # [Wv x + bv ; ones]      (C+1, Npad)
        y_aug = proj[off_y:off_y + C + 1, :]   # [(Wq^T Wk) x ; bq^T Wk x]

        # Transposed energy: keys on sublanes, queries on lanes.
        #   energy_t[j, i] = x_i^T (Wq^T Wk) x_j + (bq^T Wk x)_j
        # Only the small (C+1, Npad) operand is transposed here; the big attention
        # matmul below stays canonical (no (N, N) transpose of p).
        energy_t = lax.dot_general(
            y_aug, qa, (((0,), (0,)), ((), ())),
            preferred_element_type=jnp.float32)                        # (Npad, tq)

        if n_pad != N:  # static branch: mask padded key columns (exp -> 0)
            key_idx = lax.broadcasted_iota(jnp.int32, (n_pad, tq), 0)
            energy_t = jnp.where(key_idx < N, energy_t, jnp.float32(-1e30))

        # Numerically-stable unnormalized softmax over the key (sublane) axis.
        m = jnp.max(energy_t, axis=0, keepdims=True)                   # (1, tq)
        p = jnp.exp(energy_t - m).astype(mm_dtype)                     # (Npad, tq)

        # Canonical attention matmul (bf16 operands, f32 accumulation); the ones
        # row of v_aug yields the softmax denominator lane-dense for free.
        o_aug = jnp.dot(v_aug.astype(mm_dtype), p,
                        preferred_element_type=jnp.float32)            # (C+1, tq)
        out_un = o_aug[0:C, :]
        denom = o_aug[C:C + 1, :]

        inv = pl.reciprocal(denom, approx=True)                        # EUP slot
        inv = inv * (2.0 - denom * inv)                                # Newton step

        g = g_ref[0, 0]
        o_ref[...] = g * (out_un * inv) + qa[0:C, :]

    steps = B * n_q
    flops = 2 * steps * (R * (C + 1) * n_pad + 2 * (C + 1) * n_pad * tq)
    cost = pl.CostEstimate(
        flops=flops,
        transcendentals=steps * n_pad * tq,
        bytes_accessed=4 * (steps * (C + 1) * n_pad + R * (C + 1) + B * C * n_pad) + 8,
    )

    # Explicit VMEM budget (v7x: 64 MiB physical / 32 MiB default scoped).
    vmem_need = (
        2 * 4 * (C + 1) * n_pad        # xa block, double-buffered
        + 2 * 4 * R * (C + 1)          # fused weights
        + 2 * 4 * C * tq               # output block, double-buffered
        + 4 * R * n_pad                # proj
        + 4 * (C + 1) * n_pad          # transposed y_aug operand
        + 4 * n_pad * tq               # energy_t
        + p_bytes * n_pad * tq         # p
        + 4 * (C + 2) * tq             # o_aug + reciprocal temps
    )
    vmem_limit = int(min(max(2 * vmem_need, 32 * 2 ** 20), 48 * 2 ** 20))

    out_flat = pl.pallas_call(
        kernel,
        out_shape=jax.ShapeDtypeStruct((B, C, n_pad), jnp.float32),
        grid=(B, n_q),
        in_specs=[
            pl.BlockSpec((None, C + 1, n_pad), lambda b, q: (b, 0, 0)),  # xa slab
            pl.BlockSpec((R, C + 1), lambda b, q: (0, 0)),               # fused weights
            pl.BlockSpec(memory_space=pltpu.MemorySpace.SMEM),           # gamma scalar
        ],
        out_specs=pl.BlockSpec((None, C, tq), lambda b, q: (b, 0, q)),
        compiler_params=pltpu.CompilerParams(
            dimension_semantics=("parallel", "parallel"),
            vmem_limit_bytes=vmem_limit),
        cost_estimate=cost,
    )(xa, w_aug, gamma_r)

    if n_pad != N:
        out_flat = out_flat[:, :, :N]
    return out_flat.reshape(B, C, W, H)


def nonlocal_block_ref(x_nchw, wq, bq, wk, bk, wv, bv, gamma):
    """Pure-JAX reference mirroring the PyTorch forward exactly."""
    B, C, W, H = x_nchw.shape
    N = W * H
    x_flat = x_nchw.reshape(B, C, N)                                   # (B, C, N)
    q = jnp.einsum('oc,bcn->bon', wq, x_flat) + bq[None, :, None]      # (B, Cq, N)
    k = jnp.einsum('oc,bcn->bon', wk, x_flat) + bk[None, :, None]      # (B, Cq, N)
    v = jnp.einsum('oc,bcn->bon', wv, x_flat) + bv[None, :, None]      # (B, C, N)
    energy = jnp.einsum('bci,bcj->bij', q, k)                          # (B, N, N)
    attn = jax.nn.softmax(energy, axis=-1)
    out = jnp.einsum('bcj,bij->bci', v, attn)                          # (B, C, N)
    out = out.reshape(B, C, W, H)
    return gamma * out + x_nchw


if __name__ == "__main__":
    B, C, W, H = 2, 16, 16, 16       # C must allow C // 8 >= 1 query/key channels
    Cq = C // 8

    key = jax.random.PRNGKey(0)
    kx, kwq, kbq, kwk, kbk, kwv, kbv = jax.random.split(key, 7)

    x = jax.random.normal(kx, (B, C, W, H), dtype=jnp.float32)

    # Conv2d(k=1) weights -> (Cout, Cin); deterministic synthetic init.
    wq = 0.2 * jax.random.normal(kwq, (Cq, C), dtype=jnp.float32)
    bq = 0.1 * jax.random.normal(kbq, (Cq,), dtype=jnp.float32)
    wk = 0.2 * jax.random.normal(kwk, (Cq, C), dtype=jnp.float32)
    bk = 0.1 * jax.random.normal(kbk, (Cq,), dtype=jnp.float32)
    wv = 0.2 * jax.random.normal(kwv, (C, C), dtype=jnp.float32)
    bv = 0.1 * jax.random.normal(kbv, (C,), dtype=jnp.float32)

    gamma0 = jnp.zeros((1,), dtype=jnp.float32)   # module init: gamma = 0
    gamma1 = jnp.array([0.7], dtype=jnp.float32)

    ref0 = nonlocal_block_ref(x, wq, bq, wk, bk, wv, bv, gamma0)
    ref1 = nonlocal_block_ref(x, wq, bq, wk, bk, wv, bv, gamma1)

    # gamma = 0 (module init): residual path, exact.
    out0 = jax.block_until_ready(nonlocal_block(x, wq, bq, wk, bk, wv, bv, gamma0))
    assert jnp.allclose(out0, ref0, atol=1e-4, rtol=1e-4)

    # f32 MXU operands: validates the folded / transposed algebra at tight tolerance.
    out_f32 = jax.block_until_ready(
        nonlocal_block(x, wq, bq, wk, bk, wv, bv, gamma1, use_bf16=False))
    assert jnp.allclose(out_f32, ref1, atol=1e-4, rtol=1e-4)

    # Explicit q-tiling (grid = (B, 2)): exercises the second parallel grid axis.
    out_qt = jax.block_until_ready(
        nonlocal_block(x, wq, bq, wk, bk, wv, bv, gamma1, use_bf16=False, tq=128))
    assert jnp.allclose(out_qt, ref1, atol=1e-4, rtol=1e-4)

    # Default fast path: bf16 attention-matmul operands, f32 accumulation.
    out_bf16 = jax.block_until_ready(
        nonlocal_block(x, wq, bq, wk, bk, wv, bv, gamma1))
    assert jnp.allclose(out_bf16, ref1, atol=2e-2, rtol=2e-2)

    print("KERNEL_OK")
</pallas_src>

<mosaic_0001>
module attributes {stable_mosaic.version = 11 : i64} {
  func.func @kernel(%arg0: i32, %arg1: i32, %arg2: memref<1x17x256xf32, #tpu.memory_space<vmem>>, %arg3: memref<41x17xf32, #tpu.memory_space<vmem>>, %arg4: memref<1x1xf32, #tpu.memory_space<smem>>, %arg5: memref<1x16x256xf32, #tpu.memory_space<vmem>>) attributes {dimension_semantics = [#tpu.dimension_semantics<parallel>, #tpu.dimension_semantics<parallel>], iteration_bounds = array<i64: 2, 1>, scalar_prefetch = 0 : i64, scratch_operands = 0 : i64, tpu.core_type = #tpu.core_type<tc>, window_params = [{transform_indices = @transform_0, window_bounds = array<i64: 1, 17, 256>}, {pipeline_mode = #tpu.pipeline_mode<synchronous>, transform_indices = @transform_1, window_bounds = array<i64: 41, 17>}, {transform_indices = @transform_2, window_bounds = array<i64: 1, 1>}, {transform_indices = @transform_3, window_bounds = array<i64: 1, 16, 256>}]} {
    %c256_i32 = arith.constant 256 : i32
    %0 = arith.muli %arg1, %c256_i32 : i32
    %1 = tpu.assume_multiple %0, 256 : i32
    %c0 = arith.constant 0 : index
    %c0_0 = arith.constant 0 : index
    %c0_1 = arith.constant 0 : index
    %2 = vector.load %arg2[%c0, %c0_0, %c0_1] : memref<1x17x256xf32, #tpu.memory_space<vmem>>, vector<1x17x256xf32>
    %3 = vector.shape_cast %2 : vector<1x17x256xf32> to vector<17x256xf32>
    %c0_2 = arith.constant 0 : index
    %c0_3 = arith.constant 0 : index
    %4 = arith.index_cast %1 : i32 to index
    %5 = vector.load %arg2[%c0_2, %c0_3, %4] : memref<1x17x256xf32, #tpu.memory_space<vmem>>, vector<1x17x256xf32>
    %6 = vector.shape_cast %5 : vector<1x17x256xf32> to vector<17x256xf32>
    %c0_4 = arith.constant 0 : index
    %c0_5 = arith.constant 0 : index
    %7 = vector.load %arg3[%c0_4, %c0_5] : memref<41x17xf32, #tpu.memory_space<vmem>>, vector<41x17xf32>
    %cst = arith.constant dense<0.000000e+00> : vector<41x256xf32>
    %8 = tpu.matmul %7, %3, %cst {dimension_numbers = #tpu.dot_dimension_numbers<[1], [0], [0], [1], [0, 0, 1, 1], [], []>} : vector<41x17xf32>, vector<17x256xf32>, vector<41x256xf32> -> vector<41x256xf32>
    %9 = vector.extract_strided_slice %8 {offsets = [0, 0], sizes = [17, 256], strides = [1, 1]} : vector<41x256xf32> to vector<17x256xf32>
    %10 = vector.extract_strided_slice %8 {offsets = [24, 0], sizes = [17, 256], strides = [1, 1]} : vector<41x256xf32> to vector<17x256xf32>
    %cst_6 = arith.constant dense<0.000000e+00> : vector<256x256xf32>
    %11 = tpu.matmul %10, %6, %cst_6 {dimension_numbers = #tpu.dot_dimension_numbers<[0], [0], [1], [1], [0, 1, 1, 1], [], []>} : vector<17x256xf32>, vector<17x256xf32>, vector<256x256xf32> -> vector<256x256xf32>
    %cst_7 = arith.constant dense<0xFF800000> : vector<256xf32>
    %12 = vector.multi_reduction <maximumf>, %11, %cst_7 [0] : vector<256x256xf32> to vector<256xf32>
    %13 = vector.shape_cast %12 : vector<256xf32> to vector<1x256xf32>
    %14 = vector.broadcast %13 : vector<1x256xf32> to vector<256x256xf32>
    %15 = arith.subf %11, %14 : vector<256x256xf32>
    %16 = math.exp %15 : vector<256x256xf32>
    %17 = arith.truncf %16 : vector<256x256xf32> to vector<256x256xbf16>
    %18 = arith.truncf %9 : vector<17x256xf32> to vector<17x256xbf16>
    %cst_8 = arith.constant dense<0.000000e+00> : vector<17x256xf32>
    %19 = tpu.matmul %18, %17, %cst_8 {dimension_numbers = #tpu.dot_dimension_numbers<[1], [0], [0], [1], [0, 0, 1, 1], [], []>} : vector<17x256xbf16>, vector<256x256xbf16>, vector<17x256xf32> -> vector<17x256xf32>
    %20 = vector.extract_strided_slice %19 {offsets = [0, 0], sizes = [16, 256], strides = [1, 1]} : vector<17x256xf32> to vector<16x256xf32>
    %21 = vector.extract_strided_slice %19 {offsets = [16, 0], sizes = [1, 256], strides = [1, 1]} : vector<17x256xf32> to vector<1x256xf32>
    %22 = tpu.reciprocal %21 {approx = true} : vector<1x256xf32> -> vector<1x256xf32>
    %23 = arith.mulf %21, %22 : vector<1x256xf32>
    %cst_9 = arith.constant 2.000000e+00 : f32
    %24 = vector.broadcast %cst_9 : f32 to vector<1x256xf32>
    %25 = arith.subf %24, %23 : vector<1x256xf32>
    %26 = arith.mulf %22, %25 : vector<1x256xf32>
    %c0_10 = arith.constant 0 : index
    %c0_11 = arith.constant 0 : index
    %27 = memref.load %arg4[%c0_10, %c0_11] : memref<1x1xf32, #tpu.memory_space<smem>>
    %28 = vector.broadcast %26 : vector<1x256xf32> to vector<16x256xf32>
    %29 = arith.mulf %20, %28 : vector<16x256xf32>
    %30 = vector.broadcast %27 : f32 to vector<16x256xf32>
    %31 = arith.mulf %30, %29 : vector<16x256xf32>
    %32 = vector.extract_strided_slice %6 {offsets = [0, 0], sizes = [16, 256], strides = [1, 1]} : vector<17x256xf32> to vector<16x256xf32>
    %33 = arith.addf %31, %32 : vector<16x256xf32>
    %c0_12 = arith.constant 0 : index
    %c0_13 = arith.constant 0 : index
    %c0_14 = arith.constant 0 : index
    %34 = vector.load %arg5[%c0_12, %c0_13, %c0_14] : memref<1x16x256xf32, #tpu.memory_space<vmem>>, vector<1x16x256xf32>
    %35 = vector.shape_cast %34 : vector<1x16x256xf32> to vector<16x256xf32>
    %36 = vector.shape_cast %33 : vector<16x256xf32> to vector<1x16x256xf32>
    tpu.vector_store %arg5[%c0_12, %c0_13, %c0_14], %36 {strides = array<i32>} : memref<1x16x256xf32, #tpu.memory_space<vmem>>, vector<1x16x256xf32>,
    return
  }
  func.func @transform_0(%arg0: i32, %arg1: i32) -> (i32, i32, i32) {
    %c0_i32 = arith.constant 0 : i32
    %c0_i32_0 = arith.constant 0 : i32
    %c0_i32_1 = arith.constant 0 : i32
    return %arg0, %c0_i32, %c0_i32_0 : i32, i32, i32
  }
  func.func @transform_1(%arg0: i32, %arg1: i32) -> (i32, i32) {
    %c0_i32 = arith.constant 0 : i32
    %c0_i32_0 = arith.constant 0 : i32
    %c0_i32_1 = arith.constant 0 : i32
    return %c0_i32, %c0_i32_0 : i32, i32
  }
  func.func @transform_2(%arg0: i32, %arg1: i32) -> (i32, i32) {
    %c0_i32 = arith.constant 0 : i32
    %c0_i32_0 = arith.constant 0 : i32
    %c0_i32_1 = arith.constant 0 : i32
    return %c0_i32, %c0_i32_0 : i32, i32
  }
  func.func @transform_3(%arg0: i32, %arg1: i32) -> (i32, i32, i32) {
    %c0_i32 = arith.constant 0 : i32
    %c0_i32_0 = arith.constant 0 : i32
    return %arg0, %c0_i32, %arg1 : i32, i32, i32
  }
}

</mosaic_0001>

<llo_original>
// kernel: tpu_custom_call.1
$region0: #{tpu_custom_call.1}
  #allocation0 [shape = 'u32[]', space=smem, size = 0x4, offset = 0x4, fixed_abs, tag = 'smem constant byte address 0x4 - core index']
  #allocation1 [shape = 'u32[144,128]{1,0:T(1,128)}', space=vmem, size = 0x12000, scoped, tag = 'internal scratch']
  #allocation2 [shape = 'f32[1,1]{1,0:T(1,128)S(6)}', space=smem, size = 0x200, scoped, tag = 'scoped memory for tpu_custom_call.1']
  %s0 = inlined_call_operand.vmem [shape: f32[2,17,256], index: 0, kind: input, shape index: {}]
  %s1 = inlined_call_operand.vmem [shape: f32[41,17], index: 1, kind: input, shape index: {}]
  %s2 = inlined_call_operand.<no memory space> [shape: f32[1,1], index: 2, kind: input, shape index: {}]
  %s3 = inlined_call_operand.hbm [shape: f32[2,16,256], index: 3, kind: output, shape index: {}]
  %s4 = sld [smem:[#allocation0]]
  $region45: #{tpu_custom_call.1} parent=0
    _
  %s6 = ssub.s32 1, %s4
  %s7 = scalar_select 0, %s6, %s4
  %8 = sst [smem:[#allocation2]] %s2
  $region1: #{tpu_custom_call.1} parent=0
    #allocation3 [shape = 'u8[32768]{0}', space=vmem, size = 0x8000, scoped, tag = 'output window, operand 0']
    #allocation4 [shape = 's32[2]{0}', space=sflag, size = 0x8, scoped, tag = 'scoped memory for tpu_custom_call.1']
    %9 = vsyncpa [#allocation4], 0
    %s10 = scalar_lea.sflag [#allocation4], 1
    %11 = vsyncpa %s10, 0
    loop: start=0, step=1, limit=4
    $region2: #{tpu_custom_call.1} parent=1 // loop_pre_header
      _
    $region3: #{tpu_custom_call.1} parent=1 // loop_header
      %s13 = sphi 0, %s17
      %p14 = scmp.ge.s32.totalorder %s13, 4
      %s20 = sphi 0, %s32
      %s21 = sphi 0, %s28
      %s22 = sphi 0, %s20
      %s23 = sphi 0, %s21
      %s24 = sphi 0, %s22
      %s25 = sphi 0, %s23
      %s35 = sphi 0, %s37
      %s38 = sphi 0, %s35
      %s39 = sphi 0, %s38
      %s55 = sphi 0, %s39
      %s59 = sphi 0, %s59
      %s61 = sphi 0, %s59
      %s62 = sphi 0, %s61
      %s76 = sphi 0, %s62
      %s80 = sphi 0, %s80
      %s82 = sphi 0, %s80
      %s83 = sphi 0, %s82
      %s97 = sphi 0, %s83
      %s105 = sphi 0, %s107
      %s108 = sphi 0, %s105
      %s109 = sphi 0, %s108
      %s125 = sphi 0, %s109
    $region4: #{tpu_custom_call.1} parent=1 // loop_header_branch
      %16 = sbr.rel (%p14) target = $region8
    $region5: #{tpu_custom_call.1} parent=1 // loop_body
      %s18 = ssub.s32 %s13, 1
      %s19 = ssub.s32 %s13, 2
      %s26 = sadd.s32 1, %s21
      %p27 = scmp.ge.s32.totalorder %s26, 1
      %s28 = scalar_select %p27, 0, %s26
      %s29 = sadd.s32 1, %s20
      %s30 = scalar_select %p27, %s29, %s20
      %p31 = scmp.ge.s32.totalorder %s30, 2
      %s32 = scalar_select %p31, 0, %s30
      %s33 = ssub.s32 %s20, %s32
      %p34 = scmp.eq.s32.totalorder %s33, 0
      %s36 = sadd.s32 %s35, 1
      %s37 = scalar_select %p34, %s35, %s36
      %p40 = pneg %p34
      %p41 = scmp.eq.s32.totalorder %s13, 1
      %p42 = por %p40, %p41
      %p43 = scmp.ne.s32.totalorder %s35, %s38
      %p44 = scmp.eq.s32.totalorder %s13, 0
      %p45 = por %p43, %p44
      %p46 = scmp.ne.s32.totalorder %s35, %s38
      %p47 = scmp.eq.s32.totalorder %s18, 1
      %p48 = por %p46, %p47
      %p49 = scmp.ne.s32.totalorder %s38, %s39
      %p50 = scmp.eq.s32.totalorder %s18, 0
      %p51 = por %p49, %p50
      %p52 = scmp.ne.s32.totalorder %s38, %s39
      %p53 = scmp.eq.s32.totalorder %s19, 1
      %p54 = por %p52, %p53
      %p56 = scmp.ne.s32.totalorder %s39, %s55
      %p57 = scmp.eq.s32.totalorder %s19, 0
      %p58 = por %p56, %p57
      %s60 = sadd.s32 %s59, 1
      %p63 = scmp.eq.s32.totalorder %s13, 1
      %p64 = scmp.ne.s32.totalorder %s59, %s61
      %p65 = scmp.eq.s32.totalorder %s13, 0
      %p66 = por %p64, %p65
      %p67 = scmp.ne.s32.totalorder %s59, %s61
      %p68 = scmp.eq.s32.totalorder %s18, 1
      %p69 = por %p67, %p68
      %p70 = scmp.ne.s32.totalorder %s61, %s62
      %p71 = scmp.eq.s32.totalorder %s18, 0
      %p72 = por %p70, %p71
      %p73 = scmp.ne.s32.totalorder %s61, %s62
      %p74 = scmp.eq.s32.totalorder %s19, 1
      %p75 = por %p73, %p74
      %p77 = scmp.ne.s32.totalorder %s62, %s76
      %p78 = scmp.eq.s32.totalorder %s19, 0
      %p79 = por %p77, %p78
      %s81 = sadd.s32 %s80, 1
      %p84 = scmp.eq.s32.totalorder %s13, 1
      %p85 = scmp.ne.s32.totalorder %s80, %s82
      %p86 = scmp.eq.s32.totalorder %s13, 0
      %p87 = por %p85, %p86
      %p88 = scmp.ne.s32.totalorder %s80, %s82
      %p89 = scmp.eq.s32.totalorder %s18, 1
      %p90 = por %p88, %p89
      %p91 = scmp.ne.s32.totalorder %s82, %s83
      %p92 = scmp.eq.s32.totalorder %s18, 0
      %p93 = por %p91, %p92
      %p94 = scmp.ne.s32.totalorder %s82, %s83
      %p95 = scmp.eq.s32.totalorder %s19, 1
      %p96 = por %p94, %p95
      %p98 = scmp.ne.s32.totalorder %s83, %s97
      %p99 = scmp.eq.s32.totalorder %s19, 0
      %p100 = por %p98, %p99
      %s101 = ssub.s32 %s20, %s32
      %s102 = ssub.s32 %s21, %s28
      %s103 = sor.u32 %s101, %s102
      %p104 = scmp.eq.s32.totalorder %s103, 0
      %s106 = sadd.s32 %s105, 1
      %s107 = scalar_select %p104, %s105, %s106
      %p110 = pneg %p104
      %p111 = scmp.eq.s32.totalorder %s13, 1
      %p112 = por %p110, %p111
      %p113 = scmp.ne.s32.totalorder %s105, %s108
      %p114 = scmp.eq.s32.totalorder %s13, 0
      %p115 = por %p113, %p114
      %p116 = scmp.ne.s32.totalorder %s105, %s108
      %p117 = scmp.eq.s32.totalorder %s18, 1
      %p118 = por %p116, %p117
      %p119 = scmp.ne.s32.totalorder %s108, %s109
      %p120 = scmp.eq.s32.totalorder %s18, 0
      %p121 = por %p119, %p120
      %p122 = scmp.ne.s32.totalorder %s108, %s109
      %p123 = scmp.eq.s32.totalorder %s19, 1
      %p124 = por %p122, %p123
      %p126 = scmp.ne.s32.totalorder %s109, %s125
      %p127 = scmp.eq.s32.totalorder %s19, 0
      %p128 = por %p126, %p127
      %p129 = scmp.le.s32.totalorder 1, %s13
      %p130 = scmp.lt.s32.totalorder %s13, 3
      %p131 = pnand %p129, %p130
      %p132 = pneg %p131
      // Predicated region
      $region9: #{tpu_custom_call.1} parent=5 // pred_check
        _
      $region10: #{tpu_custom_call.1} parent=5 // pred_check_branch
        %134 = sbr.rel (%p131) target = $region12
      $region11: #{tpu_custom_call.1} parent=5 // pred_region
        %s135 = ssub.s32 %s13, 1
        // Predicated region
        $region13: #{tpu_custom_call.1} parent=11 // pred_check
          %p136 = pneg %p72
        $region14: #{tpu_custom_call.1} parent=11 // pred_check_branch
          %138 = sbr.rel (%p136) target = $region16
        $region15: #{tpu_custom_call.1} parent=11 // pred_region
          _
        $region16: #{tpu_custom_call.1} parent=11 // pred_fallthru
          _
        // Predicated region
        $region17: #{tpu_custom_call.1} parent=11 // pred_check
          %p139 = pneg %p93
        $region18: #{tpu_custom_call.1} parent=11 // pred_check_branch
          %141 = sbr.rel (%p139) target = $region20
        $region19: #{tpu_custom_call.1} parent=11 // pred_region
          _
        $region20: #{tpu_custom_call.1} parent=11 // pred_fallthru
          _
      $region12: #{tpu_custom_call.1} parent=5 // pred_fallthru
        _
      %p142 = scmp.lt.s32.totalorder %s13, 2
      // Predicated region
      $region21: #{tpu_custom_call.1} parent=5 // pred_check
        %p143 = pneg %p142
      $region22: #{tpu_custom_call.1} parent=5 // pred_check_branch
        %145 = sbr.rel (%p143) target = $region24
      $region23: #{tpu_custom_call.1} parent=5 // pred_region
        // Predicated region
        $region25: #{tpu_custom_call.1} parent=23 // pred_check
          %p146 = pneg %p45
        $region26: #{tpu_custom_call.1} parent=23 // pred_check_branch
          %148 = sbr.rel (%p146) target = $region28
        $region27: #{tpu_custom_call.1} parent=23 // pred_region
          %p149 = scmp.lt.s32.totalorder %s20, 1
          %s150 = scalar_select %p149, %s20, 1
          %s151 = smul.addr %s150, 6
          %s152 = smul.addr %s151, 8
          %s153 = scalar_lea.vmem %s0, %s152
        $region28: #{tpu_custom_call.1} parent=23 // pred_fallthru
          _
      $region24: #{tpu_custom_call.1} parent=5 // pred_fallthru
        _
      %p154 = scmp.le.s32.totalorder 1, %s13
      %p155 = scmp.lt.s32.totalorder %s13, 3
      %p156 = pnand %p154, %p155
      %p157 = pneg %p156
      // Predicated region
      $region29: #{tpu_custom_call.1} parent=5 // pred_check
        _
      $region30: #{tpu_custom_call.1} parent=5 // pred_check_branch
        %159 = sbr.rel (%p156) target = $region32
      $region31: #{tpu_custom_call.1} parent=5 // pred_region
        %s160 = ssub.s32 %s13, 1
        %p161 = scmp.lt.s32.totalorder %s22, 1
        %s162 = scalar_select %p161, %s22, 1
        %s163 = smul.addr %s162, 6
        %s164 = smul.addr %s163, 8
        %s165 = scalar_lea.vmem %s0, %s164
        %p166 = pneg %p51
        %p167 = pneg %p48
        %p168 = pneg %p72
        %p169 = pneg %p69
        %p170 = pneg %p93
        %p171 = pneg %p90
        %p172 = pneg %p121
        %p173 = pneg %p118
        %s174 = sand.u32 %s108, 1
        %s175 = scalar_lea.sflag [#allocation4], %s174
        %s176 = sand.u32 %s108, 1
        %s177 = smul.addr %s176, 32
        %s178 = scalar_lea.vmem [#allocation3], %s177
        %p179 = scmp.lt.s32.totalorder %s22, 1
        %s180 = scalar_select %p179, %s22, 1
        %s181 = smul.addr %s180, 6
        %s182 = smul.addr %s181, 8
        %s183 = scalar_lea.vmem %s0, %s182
        %s184 = smul.u32 2, %s23
        %s185 = smul.u32 %s23, 256
        %v186 = vld [vmem:[%s183] sm:$0xff]
        %v187 = vld [vmem:[%s183 + $0x8] sm:$0xff]
        %v188 = vld [vmem:[%s183 + $0x10] sm:$0xff]
        %v189 = vld [vmem:[%s183 + $0x18] sm:$0xff]
        %v190 = vld [vmem:[%s183 + $0x20] sm:$0x1]
        %v191 = vld [vmem:[%s183 + $0x28] sm:$0x1]
        %s192 = sshra.s32 %s185, 7
        %s193 = sand.u32 %s185, 127
        %s194 = smul.addr %s192, 8
        %s195 = scalar_lea.vmem %s183, %s194
        %v196 = vld [vmem:[%s195] sm:$0xff]
        %v197 = vld [vmem:[%s195 + $0x8] sm:$0xff]
        %v198 = vld [vmem:[%s195 + $0x10] sm:$0xff]
        %v199 = vld [vmem:[%s195 + $0x18] sm:$0xff]
        %v200 = vld [vmem:[%s195 + $0x20] sm:$0x1]
        %v201 = vld [vmem:[%s195 + $0x28] sm:$0x1]
        %v202 = vld [vmem:[%s1] sm:$0xff]
        %v203 = vld [vmem:[%s1 + $0x8] sm:$0xff]
        %v204 = vld [vmem:[%s1 + $0x10] sm:$0xff]
        %v205 = vld [vmem:[%s1 + $0x18] sm:$0xff]
        %v206 = vld [vmem:[%s1 + $0x20] sm:$0xff]
        %v207 = vld [vmem:[%s1 + $0x28] sm:$0x1]
        %vm208 = vcmask 138240
        %v210 = vsel %vm208, %v202, 0
        %v213 = vsel %vm208, %v203, 0
        %v216 = vsel %vm208, %v204, 0
        %v219 = vsel %vm208, %v205, 0
        %v222 = vsel %vm208, %v206, 0
        %v225 = vsel %vm208, %v207, 0
        %vm227 = vcmask 1040384
        %v229 = vsel %vm227, %v190, 0
        %v232 = vsel %vm227, %v191, 0
        %234 = vmatprep.subr.mxu0 %v187
        %235 = vmatpush1.msra.mxu0 %v186
        %236 = vmatprep.subr.mxu0 %v189
        %237 = vmatpush1.msra.mxu0 %v188
        %238 = vmatprep.subr.mxu0 %v232
        %239 = vmatpush1.msra.mxu0 %v229
        %240 = vmatprep.subr.mxu0 0.0
        %241 = vmatpush1.msra.mxu0 0.0
        %242 = vmatprep.subr.mxu0 0.0
        %243 = vmatpush1.msra.mxu0 0.0
        %244 = vmatprep.subr.mxu0 0.0
        %245 = vmatpush1.msra.mxu0 0.0
        %246 = vmatprep.subr.mxu0 0.0
        %247 = vmatpush1.msra.mxu0 0.0
        %248 = vmatprep.subr.mxu0 0.0
        %249 = vmatpush1.msra.mxu0 0.0
        %250 = vmatprep.subr.mxu0 0.0
        %251 = vmatpush1.msra.mxu0 0.0
        %252 = vmatprep.subr.mxu0 0.0
        %253 = vmatpush1.msra.mxu0 0.0
        %254 = vmatprep.subr.mxu0 0.0
        %255 = vmatpush1.msra.mxu0 0.0
        %256 = vmatprep.subr.mxu0 0.0
        %257 = vmatpush1.msra.mxu0 0.0
        %258 = vmatprep.subr.mxu0 0.0
        %259 = vmatpush1.msra.mxu0 0.0
        %260 = vmatprep.subr.mxu0 0.0
        %261 = vmatpush1.msra.mxu0 0.0
        %262 = vmatprep.subr.mxu0 0.0
        %263 = vmatpush1.msra.mxu0 0.0
        %264 = vmatprep.subr.mxu0 0.0
        %265 = vmatpush1.msra.mxu0 0.0
        %266 = vmatprep.subr.mxu0 0.0
        %267 = vmatpush1.msra.mxu0 0.0
        %268 = vmatprep.subr.mxu0 0.0
        %269 = vmatpush1.msra.mxu0 0.0
        %270 = vmatprep.subr.mxu0 0.0
        %271 = vmatpush1.msra.mxu0 0.0
        %272 = vmatprep.subr.mxu0 0.0
        %273 = vmatpush1.msra.mxu0 0.0
        %274 = vmatprep.subr.mxu0 0.0
        %275 = vmatpush1.msra.mxu0 0.0
        %276 = vmatprep.subr.mxu0 0.0
        %277 = vmatpush1.msra.mxu0 0.0
        %278 = vmatprep.subr.mxu0 0.0
        %279 = vmatpush1.msra.mxu0 0.0
        %280 = vmatprep.subr.mxu0 0.0
        %281 = vmatpush1.msra.mxu0 0.0
        %282 = vmatprep.subr.mxu0 0.0
        %283 = vmatpush1.msra.mxu0 0.0
        %284 = vmatprep.subr.mxu0 0.0
        %285 = vmatpush1.msra.mxu0 0.0
        %286 = vmatprep.subr.mxu0 0.0
        %287 = vmatpush1.msra.mxu0 0.0
        %288 = vmatprep.subr.mxu0 0.0
        %289 = vmatpush1.msra.mxu0 0.0
        %290 = vmatprep.subr.mxu0 0.0
        %291 = vmatpush1.msra.mxu0 0.0
        %292 = vmatprep.subr.mxu0 0.0
        %293 = vmatpush1.msra.mxu0 0.0
        %294 = vmatprep.subr.mxu0 0.0
        %295 = vmatpush1.msra.mxu0 0.0
        %296 = vmatprep.subr.mxu0 0.0
        %297 = vmatpush1.msra.mxu0 0.0
        %298 = vmatprep.mubr.f32.mxu0 0.0
        %299 = vmatmul.mubr.f32.gmra.mrb[0].mxu0 %v210
        %v300 = vpop.f32.mrb[0].mxu0
        %v301 = vadd.f32 0.0, %v300
        %v302 = vpop.f32.mrb[0].mxu0
        %v303 = vadd.f32 0.0, %v302
        %304 = vmatprep.mubr.f32.mxu0 0.0
        %305 = vmatmul.mubr.f32.gmra.mrb[0].mxu0 %v213
        %v306 = vpop.f32.mrb[0].mxu0
        %v307 = vadd.f32 0.0, %v306
        %v308 = vpop.f32.mrb[0].mxu0
        %v309 = vadd.f32 0.0, %v308
        %310 = vmatprep.mubr.f32.mxu0 0.0
        %311 = vmatmul.mubr.f32.gmra.mrb[0].mxu0 %v216
        %v312 = vpop.f32.mrb[0].mxu0
        %v313 = vadd.f32 0.0, %v312
        %v314 = vpop.f32.mrb[0].mxu0
        %v315 = vadd.f32 0.0, %v314
        %316 = vmatprep.mubr.f32.mxu0 0.0
        %317 = vmatmul.mubr.f32.gmra.mrb[0].mxu0 %v219
        %v318 = vpop.f32.mrb[0].mxu0
        %v319 = vadd.f32 0.0, %v318
        %v320 = vpop.f32.mrb[0].mxu0
        %v321 = vadd.f32 0.0, %v320
        %322 = vmatprep.mubr.f32.mxu0 0.0
        %323 = vmatmul.mubr.f32.gmra.mrb[0].mxu0 %v222
        %v324 = vpop.f32.mrb[0].mxu0
        %v325 = vadd.f32 0.0, %v324
        %v326 = vpop.f32.mrb[0].mxu0
        %v327 = vadd.f32 0.0, %v326
        %328 = vmatprep.mubr.f32.mxu0 0.0
        %329 = vmatmul.mubr.f32.gmra.mrb[0].mxu0 %v225
        %v330 = vpop.f32.mrb[0].mxu0
        %v331 = vadd.f32 0.0, %v330
        %v332 = vpop.f32.mrb[0].mxu0
        %v333 = vadd.f32 0.0, %v332
        %334 = vdwg.mxu0
        %335 = vxpose.xlu0.b32.start [1/16] %v319, 128
        %336 = vxpose.xlu0.b32.cont [2/16] %v325, 128
        %337 = vxpose.xlu0.b32.cont [3/16] %v331, 128
        %338 = vxpose.xlu0.b32.cont [4/16] 0.0, 128
        %339 = vxpose.xlu0.b32.cont [5/16] 0.0, 128
        %340 = vxpose.xlu0.b32.cont [6/16] 0.0, 128
        %341 = vxpose.xlu0.b32.cont [7/16] 0.0, 128
        %342 = vxpose.xlu0.b32.cont [8/16] 0.0, 128
        %343 = vxpose.xlu0.b32.cont [9/16] 0.0, 128
        %344 = vxpose.xlu0.b32.cont [10/16] 0.0, 128
        %345 = vxpose.xlu0.b32.cont [11/16] 0.0, 128
        %346 = vxpose.xlu0.b32.cont [12/16] 0.0, 128
        %347 = vxpose.xlu0.b32.cont [13/16] 0.0, 128
        %348 = vxpose.xlu0.b32.cont [14/16] 0.0, 128
        %349 = vxpose.xlu0.b32.cont [15/16] 0.0, 128
        %350 = vxpose.xlu0.b32.end [16/16] 0.0, 128
        %v351 = vpop.trf.xlu0
        %v352 = vpop.trf.xlu0
        %v353 = vpop.trf.xlu0
        %v354 = vpop.trf.xlu0
        %v355 = vpop.trf.xlu0
        %v356 = vpop.trf.xlu0
        %v357 = vpop.trf.xlu0
        %v358 = vpop.trf.xlu0
        %v359 = vpop.trf.xlu0
        %v360 = vpop.trf.xlu0
        %v361 = vpop.trf.xlu0
        %v362 = vpop.trf.xlu0
        %v363 = vpop.trf.xlu0
        %v364 = vpop.trf.xlu0
        %v365 = vpop.trf.xlu0
        %v366 = vpop.trf.xlu0
        %367 = vxpose.xlu0.b32.start [1/16] %v321, 128
        %368 = vxpose.xlu0.b32.cont [2/16] %v327, 128
        %369 = vxpose.xlu0.b32.cont [3/16] %v333, 128
        %370 = vxpose.xlu0.b32.cont [4/16] 0.0, 128
        %371 = vxpose.xlu0.b32.cont [5/16] 0.0, 128
        %372 = vxpose.xlu0.b32.cont [6/16] 0.0, 128
        %373 = vxpose.xlu0.b32.cont [7/16] 0.0, 128
        %374 = vxpose.xlu0.b32.cont [8/16] 0.0, 128
        %375 = vxpose.xlu0.b32.cont [9/16] 0.0, 128
        %376 = vxpose.xlu0.b32.cont [10/16] 0.0, 128
        %377 = vxpose.xlu0.b32.cont [11/16] 0.0, 128
        %378 = vxpose.xlu0.b32.cont [12/16] 0.0, 128
        %379 = vxpose.xlu0.b32.cont [13/16] 0.0, 128
        %380 = vxpose.xlu0.b32.cont [14/16] 0.0, 128
        %381 = vxpose.xlu0.b32.cont [15/16] 0.0, 128
        %382 = vxpose.xlu0.b32.end [16/16] 0.0, 128
        %v383 = vpop.trf.xlu0
        %v384 = vpop.trf.xlu0
        %v385 = vpop.trf.xlu0
        %v386 = vpop.trf.xlu0
        %v387 = vpop.trf.xlu0
        %v388 = vpop.trf.xlu0
        %v389 = vpop.trf.xlu0
        %v390 = vpop.trf.xlu0
        %v391 = vpop.trf.xlu0
        %v392 = vpop.trf.xlu0
        %v393 = vpop.trf.xlu0
        %v394 = vpop.trf.xlu0
        %v395 = vpop.trf.xlu0
        %v396 = vpop.trf.xlu0
        %v397 = vpop.trf.xlu0
        %v398 = vpop.trf.xlu0
        %v400 = vsel %vm208, %v351, 0
        %v403 = vsel %vm208, %v352, 0
        %v406 = vsel %vm208, %v353, 0
        %v409 = vsel %vm208, %v354, 0
        %v412 = vsel %vm208, %v355, 0
        %v415 = vsel %vm208, %v356, 0
        %v418 = vsel %vm208, %v357, 0
        %v421 = vsel %vm208, %v358, 0
        %v424 = vsel %vm208, %v359, 0
        %v427 = vsel %vm208, %v360, 0
        %v430 = vsel %vm208, %v361, 0
        %v433 = vsel %vm208, %v362, 0
        %v436 = vsel %vm208, %v363, 0
        %v439 = vsel %vm208, %v364, 0
        %v442 = vsel %vm208, %v365, 0
        %v445 = vsel %vm208, %v366, 0
        %v448 = vsel %vm208, %v383, 0
        %v451 = vsel %vm208, %v384, 0
        %v454 = vsel %vm208, %v385, 0
        %v457 = vsel %vm208, %v386, 0
        %v460 = vsel %vm208, %v387, 0
        %v463 = vsel %vm208, %v388, 0
        %v466 = vsel %vm208, %v389, 0
        %v469 = vsel %vm208, %v390, 0
        %v472 = vsel %vm208, %v391, 0
        %v475 = vsel %vm208, %v392, 0
        %v478 = vsel %vm208, %v393, 0
        %v481 = vsel %vm208, %v394, 0
        %v484 = vsel %vm208, %v395, 0
        %v487 = vsel %vm208, %v396, 0
        %v490 = vsel %vm208, %v397, 0
        %v493 = vsel %vm208, %v398, 0
        %v496 = vsel %vm227, %v200, 0
        %v499 = vsel %vm227, %v201, 0
        %501 = vmatprep.subr.mxu0 %v197
        %502 = vmatpush1.msra.mxu0 %v196
        %503 = vmatprep.subr.mxu0 %v199
        %504 = vmatpush1.msra.mxu0 %v198
        %505 = vmatprep.subr.mxu0 %v499
        %506 = vmatpush1.msra.mxu0 %v496
        %507 = vmatprep.subr.mxu0 0.0
        %508 = vmatpush1.msra.mxu0 0.0
        %509 = vmatprep.subr.mxu0 0.0
        %510 = vmatpush1.msra.mxu0 0.0
        %511 = vmatprep.subr.mxu0 0.0
        %512 = vmatpush1.msra.mxu0 0.0
        %513 = vmatprep.subr.mxu0 0.0
        %514 = vmatpush1.msra.mxu0 0.0
        %515 = vmatprep.subr.mxu0 0.0
        %516 = vmatpush1.msra.mxu0 0.0
        %517 = vmatprep.subr.mxu0 0.0
        %518 = vmatpush1.msra.mxu0 0.0
        %519 = vmatprep.subr.mxu0 0.0
        %520 = vmatpush1.msra.mxu0 0.0
        %521 = vmatprep.subr.mxu0 0.0
        %522 = vmatpush1.msra.mxu0 0.0
        %523 = vmatprep.subr.mxu0 0.0
        %524 = vmatpush1.msra.mxu0 0.0
        %525 = vmatprep.subr.mxu0 0.0
        %526 = vmatpush1.msra.mxu0 0.0
        %527 = vmatprep.subr.mxu0 0.0
        %528 = vmatpush1.msra.mxu0 0.0
        %529 = vmatprep.subr.mxu0 0.0
        %530 = vmatpush1.msra.mxu0 0.0
        %531 = vmatprep.subr.mxu0 0.0
        %532 = vmatpush1.msra.mxu0 0.0
        %533 = vmatprep.subr.mxu0 0.0
        %534 = vmatpush1.msra.mxu0 0.0
        %535 = vmatprep.subr.mxu0 0.0
        %536 = vmatpush1.msra.mxu0 0.0
        %537 = vmatprep.subr.mxu0 0.0
        %538 = vmatpush1.msra.mxu0 0.0
        %539 = vmatprep.subr.mxu0 0.0
        %540 = vmatpush1.msra.mxu0 0.0
        %541 = vmatprep.subr.mxu0 0.0
        %542 = vmatpush1.msra.mxu0 0.0
        %543 = vmatprep.subr.mxu0 0.0
        %544 = vmatpush1.msra.mxu0 0.0
        %545 = vmatprep.subr.mxu0 0.0
        %546 = vmatpush1.msra.mxu0 0.0
        %547 = vmatprep.subr.mxu0 0.0
        %548 = vmatpush1.msra.mxu0 0.0
        %549 = vmatprep.subr.mxu0 0.0
        %550 = vmatpush1.msra.mxu0 0.0
        %551 = vmatprep.subr.mxu0 0.0
        %552 = vmatpush1.msra.mxu0 0.0
        %553 = vmatprep.subr.mxu0 0.0
        %554 = vmatpush1.msra.mxu0 0.0
        %555 = vmatprep.subr.mxu0 0.0
        %556 = vmatpush1.msra.mxu0 0.0
        %557 = vmatprep.subr.mxu0 0.0
        %558 = vmatpush1.msra.mxu0 0.0
        %559 = vmatprep.subr.mxu0 0.0
        %560 = vmatpush1.msra.mxu0 0.0
        %561 = vmatprep.subr.mxu0 0.0
        %562 = vmatpush1.msra.mxu0 0.0
        %563 = vmatprep.subr.mxu0 0.0
        %564 = vmatpush1.msra.mxu0 0.0
        %565 = vmatprep.mubr.f32.mxu0 0.0
        %566 = vmatmul.mubr.f32.gmra.mrb[0].mxu0 %v400
        %v567 = vpop.f32.mrb[0].mxu0
        %v568 = vadd.f32 0.0, %v567
        %v569 = vpop.f32.mrb[0].mxu0
        %v570 = vadd.f32 0.0, %v569
        %571 = vmatprep.mubr.f32.mxu0 0.0
        %572 = vmatmul.mubr.f32.gmra.mrb[0].mxu0 %v403
        %v573 = vpop.f32.mrb[0].mxu0
        %v574 = vadd.f32 0.0, %v573
        %v575 = vpop.f32.mrb[0].mxu0
        %v576 = vadd.f32 0.0, %v575
        %577 = vmatprep.mubr.f32.mxu0 0.0
        %578 = vmatmul.mubr.f32.gmra.mrb[0].mxu0 %v406
        %v579 = vpop.f32.mrb[0].mxu0
        %v580 = vadd.f32 0.0, %v579
        %v581 = vpop.f32.mrb[0].mxu0
        %v582 = vadd.f32 0.0, %v581
        %583 = vmatprep.mubr.f32.mxu0 0.0
        %584 = vmatmul.mubr.f32.gmra.mrb[0].mxu0 %v409
        %v585 = vpop.f32.mrb[0].mxu0
        %v586 = vadd.f32 0.0, %v585
        %v587 = vpop.f32.mrb[0].mxu0
        %v588 = vadd.f32 0.0, %v587
        %589 = vmatprep.mubr.f32.mxu0 0.0
        %590 = vmatmul.mubr.f32.gmra.mrb[0].mxu0 %v412
        %v591 = vpop.f32.mrb[0].mxu0
        %v592 = vadd.f32 0.0, %v591
        %v593 = vpop.f32.mrb[0].mxu0
        %v594 = vadd.f32 0.0, %v593
        %595 = vmatprep.mubr.f32.mxu0 0.0
        %596 = vmatmul.mubr.f32.gmra.mrb[0].mxu0 %v415
        %v597 = vpop.f32.mrb[0].mxu0
        %v598 = vadd.f32 0.0, %v597
        %v599 = vpop.f32.mrb[0].mxu0
        %v600 = vadd.f32 0.0, %v599
        %601 = vmatprep.mubr.f32.mxu0 0.0
        %602 = vmatmul.mubr.f32.gmra.mrb[0].mxu0 %v418
        %v603 = vpop.f32.mrb[0].mxu0
        %v604 = vadd.f32 0.0, %v603
        %v605 = vpop.f32.mrb[0].mxu0
        %v606 = vadd.f32 0.0, %v605
        %607 = vmatprep.mubr.f32.mxu0 0.0
        %608 = vmatmul.mubr.f32.gmra.mrb[0].mxu0 %v421
        %v609 = vpop.f32.mrb[0].mxu0
        %v610 = vadd.f32 0.0, %v609
        %v611 = vpop.f32.mrb[0].mxu0
        %v612 = vadd.f32 0.0, %v611
        %613 = vmatprep.mubr.f32.mxu0 0.0
        %614 = vmatmul.mubr.f32.gmra.mrb[0].mxu0 %v424
        %v615 = vpop.f32.mrb[0].mxu0
        %v616 = vadd.f32 0.0, %v615
        %v617 = vpop.f32.mrb[0].mxu0
        %v618 = vadd.f32 0.0, %v617
        %619 = vmatprep.mubr.f32.mxu0 0.0
        %620 = vmatmul.mubr.f32.gmra.mrb[0].mxu0 %v427
        %v621 = vpop.f32.mrb[0].mxu0
        %v622 = vadd.f32 0.0, %v621
        %v623 = vpop.f32.mrb[0].mxu0
        %v624 = vadd.f32 0.0, %v623
        %625 = vmatprep.mubr.f32.mxu0 0.0
        %626 = vmatmul.mubr.f32.gmra.mrb[0].mxu0 %v430
        %v627 = vpop.f32.mrb[0].mxu0
        %v628 = vadd.f32 0.0, %v627
        %v629 = vpop.f32.mrb[0].mxu0
        %v630 = vadd.f32 0.0, %v629
        %631 = vmatprep.mubr.f32.mxu0 0.0
        %632 = vmatmul.mubr.f32.gmra.mrb[0].mxu0 %v433
        %v633 = vpop.f32.mrb[0].mxu0
        %v634 = vadd.f32 0.0, %v633
        %v635 = vpop.f32.mrb[0].mxu0
        %v636 = vadd.f32 0.0, %v635
        %637 = vmatprep.mubr.f32.mxu0 0.0
        %638 = vmatmul.mubr.f32.gmra.mrb[0].mxu0 %v436
        %v639 = vpop.f32.mrb[0].mxu0
        %v640 = vadd.f32 0.0, %v639
        %v641 = vpop.f32.mrb[0].mxu0
        %v642 = vadd.f32 0.0, %v641
        %643 = vmatprep.mubr.f32.mxu0 0.0
        %644 = vmatmul.mubr.f32.gmra.mrb[0].mxu0 %v439
        %v645 = vpop.f32.mrb[0].mxu0
        %v646 = vadd.f32 0.0, %v645
        %v647 = vpop.f32.mrb[0].mxu0
        %v648 = vadd.f32 0.0, %v647
        %649 = vmatprep.mubr.f32.mxu0 0.0
        %650 = vmatmul.mubr.f32.gmra.mrb[0].mxu0 %v442
        %v651 = vpop.f32.mrb[0].mxu0
        %v652 = vadd.f32 0.0, %v651
        %v653 = vpop.f32.mrb[0].mxu0
        %v654 = vadd.f32 0.0, %v653
        %655 = vmatprep.mubr.f32.mxu0 0.0
        %656 = vmatmul.mubr.f32.gmra.mrb[0].mxu0 %v445
        %v657 = vpop.f32.mrb[0].mxu0
        %v658 = vadd.f32 0.0, %v657
        %v659 = vpop.f32.mrb[0].mxu0
        %v660 = vadd.f32 0.0, %v659
        %661 = vmatprep.mubr.f32.mxu0 0.0
        %662 = vmatmul.mubr.f32.gmra.mrb[0].mxu0 %v448
        %v663 = vpop.f32.mrb[0].mxu0
        %v664 = vadd.f32 0.0, %v663
        %v665 = vpop.f32.mrb[0].mxu0
        %v666 = vadd.f32 0.0, %v665
        %667 = vmatprep.mubr.f32.mxu0 0.0
        %668 = vmatmul.mubr.f32.gmra.mrb[0].mxu0 %v451
        %v669 = vpop.f32.mrb[0].mxu0
        %v670 = vadd.f32 0.0, %v669
        %v671 = vpop.f32.mrb[0].mxu0
        %v672 = vadd.f32 0.0, %v671
        %673 = vmatprep.mubr.f32.mxu0 0.0
        %674 = vmatmul.mubr.f32.gmra.mrb[0].mxu0 %v454
        %v675 = vpop.f32.mrb[0].mxu0
        %v676 = vadd.f32 0.0, %v675
        %v677 = vpop.f32.mrb[0].mxu0
        %v678 = vadd.f32 0.0, %v677
        %679 = vmatprep.mubr.f32.mxu0 0.0
        %680 = vmatmul.mubr.f32.gmra.mrb[0].mxu0 %v457
        %v681 = vpop.f32.mrb[0].mxu0
        %v682 = vadd.f32 0.0, %v681
        %v683 = vpop.f32.mrb[0].mxu0
        %v684 = vadd.f32 0.0, %v683
        %685 = vmatprep.mubr.f32.mxu0 0.0
        %686 = vmatmul.mubr.f32.gmra.mrb[0].mxu0 %v460
        %v687 = vpop.f32.mrb[0].mxu0
        %v688 = vadd.f32 0.0, %v687
        %v689 = vpop.f32.mrb[0].mxu0
        %v690 = vadd.f32 0.0, %v689
        %691 = vmatprep.mubr.f32.mxu0 0.0
        %692 = vmatmul.mubr.f32.gmra.mrb[0].mxu0 %v463
        %v693 = vpop.f32.mrb[0].mxu0
        %v694 = vadd.f32 0.0, %v693
        %v695 = vpop.f32.mrb[0].mxu0
        %v696 = vadd.f32 0.0, %v695
        %697 = vmatprep.mubr.f32.mxu0 0.0
        %698 = vmatmul.mubr.f32.gmra.mrb[0].mxu0 %v466
        %v699 = vpop.f32.mrb[0].mxu0
        %v700 = vadd.f32 0.0, %v699
        %v701 = vpop.f32.mrb[0].mxu0
        %v702 = vadd.f32 0.0, %v701
        %703 = vmatprep.mubr.f32.mxu0 0.0
        %704 = vmatmul.mubr.f32.gmra.mrb[0].mxu0 %v469
        %v705 = vpop.f32.mrb[0].mxu0
        %v706 = vadd.f32 0.0, %v705
        %v707 = vpop.f32.mrb[0].mxu0
        %v708 = vadd.f32 0.0, %v707
        %709 = vmatprep.mubr.f32.mxu0 0.0
        %710 = vmatmul.mubr.f32.gmra.mrb[0].mxu0 %v472
        %v711 = vpop.f32.mrb[0].mxu0
        %v712 = vadd.f32 0.0, %v711
        %v713 = vpop.f32.mrb[0].mxu0
        %v714 = vadd.f32 0.0, %v713
        %715 = vmatprep.mubr.f32.mxu0 0.0
        %716 = vmatmul.mubr.f32.gmra.mrb[0].mxu0 %v475
        %v717 = vpop.f32.mrb[0].mxu0
        %v718 = vadd.f32 0.0, %v717
        %v719 = vpop.f32.mrb[0].mxu0
        %v720 = vadd.f32 0.0, %v719
        %721 = vmatprep.mubr.f32.mxu0 0.0
        %722 = vmatmul.mubr.f32.gmra.mrb[0].mxu0 %v478
        %v723 = vpop.f32.mrb[0].mxu0
        %v724 = vadd.f32 0.0, %v723
        %v725 = vpop.f32.mrb[0].mxu0
        %v726 = vadd.f32 0.0, %v725
        %727 = vmatprep.mubr.f32.mxu0 0.0
        %728 = vmatmul.mubr.f32.gmra.mrb[0].mxu0 %v481
        %v729 = vpop.f32.mrb[0].mxu0
        %v730 = vadd.f32 0.0, %v729
        %v731 = vpop.f32.mrb[0].mxu0
        %v732 = vadd.f32 0.0, %v731
        %733 = vmatprep.mubr.f32.mxu0 0.0
        %734 = vmatmul.mubr.f32.gmra.mrb[0].mxu0 %v484
        %v735 = vpop.f32.mrb[0].mxu0
        %v736 = vadd.f32 0.0, %v735
        %v737 = vpop.f32.mrb[0].mxu0
        %v738 = vadd.f32 0.0, %v737
        %739 = vmatprep.mubr.f32.mxu0 0.0
        %740 = vmatmul.mubr.f32.gmra.mrb[0].mxu0 %v487
        %v741 = vpop.f32.mrb[0].mxu0
        %v742 = vadd.f32 0.0, %v741
        %v743 = vpop.f32.mrb[0].mxu0
        %v744 = vadd.f32 0.0, %v743
        %745 = vmatprep.mubr.f32.mxu0 0.0
        %746 = vmatmul.mubr.f32.gmra.mrb[0].mxu0 %v490
        %v747 = vpop.f32.mrb[0].mxu0
        %v748 = vadd.f32 0.0, %v747
        %v749 = vpop.f32.mrb[0].mxu0
        %v750 = vadd.f32 0.0, %v749
        %751 = vmatprep.mubr.f32.mxu0 0.0
        %752 = vmatmul.mubr.f32.gmra.mrb[0].mxu0 %v493
        %v753 = vpop.f32.mrb[0].mxu0
        %v754 = vadd.f32 0.0, %v753
        %v755 = vpop.f32.mrb[0].mxu0
        %v756 = vadd.f32 0.0, %v755
        %757 = vdwg.mxu0
        %v758 = vmax.f32 %v568, %v580
        %v759 = vmax.f32 %v574, %v586
        %v760 = vmax.f32 %v758, %v592
        %v761 = vmax.f32 %v759, %v598
        %v762 = vmax.f32 %v760, %v604
        %v763 = vmax.f32 %v761, %v610
        %v764 = vmax.f32 %v762, %v616
        %v765 = vmax.f32 %v763, %v622
        %v766 = vmax.f32 %v764, %v628
        %v767 = vmax.f32 %v765, %v634
        %v768 = vmax.f32 %v766, %v640
        %v769 = vmax.f32 %v767, %v646
        %v770 = vmax.f32 %v768, %v652
        %v771 = vmax.f32 %v769, %v658
        %v772 = vmax.f32 %v770, %v664
        %v773 = vmax.f32 %v771, %v670
        %v774 = vmax.f32 %v772, %v676
        %v775 = vmax.f32 %v773, %v682
        %v776 = vmax.f32 %v774, %v688
        %v777 = vmax.f32 %v775, %v694
        %v778 = vmax.f32 %v776, %v700
        %v779 = vmax.f32 %v777, %v706
        %v780 = vmax.f32 %v778, %v712
        %v781 = vmax.f32 %v779, %v718
        %v782 = vmax.f32 %v780, %v724
        %v783 = vmax.f32 %v781, %v730
        %v784 = vmax.f32 %v782, %v736
        %v785 = vmax.f32 %v783, %v742
        %v786 = vmax.f32 %v784, %v748
        %v787 = vmax.f32 %v785, %v754
        %v788 = vmax.f32 %v786, %v787
        %v789 = vrot.slane %v788, 4
        %v790 = vmax.f32 %v788, %v789
        %v791 = vrot.slane %v790, 2
        %v792 = vmax.f32 %v790, %v791
        %v793 = vrot.slane %v792, 1
        %v794 = vmax.f32 %v792, %v793
        %v795 = vmax.f32 %v570, %v582
        %v796 = vmax.f32 %v576, %v588
        %v797 = vmax.f32 %v795, %v594
        %v798 = vmax.f32 %v796, %v600
        %v799 = vmax.f32 %v797, %v606
        %v800 = vmax.f32 %v798, %v612
        %v801 = vmax.f32 %v799, %v618
        %v802 = vmax.f32 %v800, %v624
        %v803 = vmax.f32 %v801, %v630
        %v804 = vmax.f32 %v802, %v636
        %v805 = vmax.f32 %v803, %v642
        %v806 = vmax.f32 %v804, %v648
        %v807 = vmax.f32 %v805, %v654
        %v808 = vmax.f32 %v806, %v660
        %v809 = vmax.f32 %v807, %v666
        %v810 = vmax.f32 %v808, %v672
        %v811 = vmax.f32 %v809, %v678
        %v812 = vmax.f32 %v810, %v684
        %v813 = vmax.f32 %v811, %v690
        %v814 = vmax.f32 %v812, %v696
        %v815 = vmax.f32 %v813, %v702
        %v816 = vmax.f32 %v814, %v708
        %v817 = vmax.f32 %v815, %v714
        %v818 = vmax.f32 %v816, %v720
        %v819 = vmax.f32 %v817, %v726
        %v820 = vmax.f32 %v818, %v732
        %v821 = vmax.f32 %v819, %v738
        %v822 = vmax.f32 %v820, %v744
        %v823 = vmax.f32 %v821, %v750
        %v824 = vmax.f32 %v822, %v756
        %v825 = vmax.f32 %v823, %v824
        %v826 = vrot.slane %v825, 4
        %v827 = vmax.f32 %v825, %v826
        %v828 = vrot.slane %v827, 2
        %v829 = vmax.f32 %v827, %v828
        %v830 = vrot.slane %v829, 1
        %v831 = vmax.f32 %v829, %v830
        %v832 = vsub.f32 %v568, %v794
        %v833 = vsub.f32 %v570, %v831
        %v834 = vsub.f32 %v574, %v794
        %v835 = vsub.f32 %v576, %v831
        %v836 = vsub.f32 %v580, %v794
        %v837 = vsub.f32 %v582, %v831
        %v838 = vsub.f32 %v586, %v794
        %v839 = vsub.f32 %v588, %v831
        %v840 = vsub.f32 %v592, %v794
        %v841 = vsub.f32 %v594, %v831
        %v842 = vsub.f32 %v598, %v794
        %v843 = vsub.f32 %v600, %v831
        %v844 = vsub.f32 %v604, %v794
        %v845 = vsub.f32 %v606, %v831
        %v846 = vsub.f32 %v610, %v794
        %v847 = vsub.f32 %v612, %v831
        %v848 = vsub.f32 %v616, %v794
        %v849 = vsub.f32 %v618, %v831
        %v850 = vsub.f32 %v622, %v794
        %v851 = vsub.f32 %v624, %v831
        %v852 = vsub.f32 %v628, %v794
        %v853 = vsub.f32 %v630, %v831
        %v854 = vsub.f32 %v634, %v794
        %v855 = vsub.f32 %v636, %v831
        %v856 = vsub.f32 %v640, %v794
        %v857 = vsub.f32 %v642, %v831
        %v858 = vsub.f32 %v646, %v794
        %v859 = vsub.f32 %v648, %v831
        %v860 = vsub.f32 %v652, %v794
        %v861 = vsub.f32 %v654, %v831
        %v862 = vsub.f32 %v658, %v794
        %v863 = vsub.f32 %v660, %v831
        %v864 = vsub.f32 %v664, %v794
        %v865 = vsub.f32 %v666, %v831
        %v866 = vsub.f32 %v670, %v794
        %v867 = vsub.f32 %v672, %v831
        %v868 = vsub.f32 %v676, %v794
        %v869 = vsub.f32 %v678, %v831
        %v870 = vsub.f32 %v682, %v794
        %v871 = vsub.f32 %v684, %v831
        %v872 = vsub.f32 %v688, %v794
        %v873 = vsub.f32 %v690, %v831
        %v874 = vsub.f32 %v694, %v794
        %v875 = vsub.f32 %v696, %v831
        %v876 = vsub.f32 %v700, %v794
        %v877 = vsub.f32 %v702, %v831
        %v878 = vsub.f32 %v706, %v794
        %v879 = vsub.f32 %v708, %v831
        %v880 = vsub.f32 %v712, %v794
        %v881 = vsub.f32 %v714, %v831
        %v882 = vsub.f32 %v718, %v794
        %v883 = vsub.f32 %v720, %v831
        %v884 = vsub.f32 %v724, %v794
        %v885 = vsub.f32 %v726, %v831
        %v886 = vsub.f32 %v730, %v794
        %v887 = vsub.f32 %v732, %v831
        %v888 = vsub.f32 %v736, %v794
        %v889 = vsub.f32 %v738, %v831
        %v890 = vsub.f32 %v742, %v794
        %v891 = vsub.f32 %v744, %v831
        %v892 = vsub.f32 %v748, %v794
        %v893 = vsub.f32 %v750, %v831
        %v894 = vsub.f32 %v754, %v794
        %v895 = vsub.f32 %v756, %v831
        %v896 = vmul.f32 %v832, 1.442695
        %v897 = vpow.pop %v896
        %v898 = vmul.f32 %v833, 1.442695
        %v899 = vpow.pop %v898
        %v900 = vmul.f32 %v834, 1.442695
        %v901 = vpow.pop %v900
        %v902 = vmul.f32 %v835, 1.442695
        %v903 = vpow.pop %v902
        %v904 = vmul.f32 %v836, 1.442695
        %v905 = vpow.pop %v904
        %v906 = vmul.f32 %v837, 1.442695
        %v907 = vpow.pop %v906
        %v908 = vmul.f32 %v838, 1.442695
        %v909 = vpow.pop %v908
        %v910 = vmul.f32 %v839, 1.442695
        %v911 = vpow.pop %v910
        %v912 = vmul.f32 %v840, 1.442695
        %v913 = vpow.pop %v912
        %v914 = vmul.f32 %v841, 1.442695
        %v915 = vpow.pop %v914
        %v916 = vmul.f32 %v842, 1.442695
        %v917 = vpow.pop %v916
        %v918 = vmul.f32 %v843, 1.442695
        %v919 = vpow.pop %v918
        %v920 = vmul.f32 %v844, 1.442695
        %v921 = vpow.pop %v920
        %v922 = vmul.f32 %v845, 1.442695
        %v923 = vpow.pop %v922
        %v924 = vmul.f32 %v846, 1.442695
        %v925 = vpow.pop %v924
        %v926 = vmul.f32 %v847, 1.442695
        %v927 = vpow.pop %v926
        %v928 = vmul.f32 %v848, 1.442695
        %v929 = vpow.pop %v928
        %v930 = vmul.f32 %v849, 1.442695
        %v931 = vpow.pop %v930
        %v932 = vmul.f32 %v850, 1.442695
        %v933 = vpow.pop %v932
        %v934 = vmul.f32 %v851, 1.442695
        %v935 = vpow.pop %v934
        %v936 = vmul.f32 %v852, 1.442695
        %v937 = vpow.pop %v936
        %v938 = vmul.f32 %v853, 1.442695
        %v939 = vpow.pop %v938
        %v940 = vmul.f32 %v854, 1.442695
        %v941 = vpow.pop %v940
        %v942 = vmul.f32 %v855, 1.442695
        %v943 = vpow.pop %v942
        %v944 = vmul.f32 %v856, 1.442695
        %v945 = vpow.pop %v944
        %v946 = vmul.f32 %v857, 1.442695
        %v947 = vpow.pop %v946
        %v948 = vmul.f32 %v858, 1.442695
        %v949 = vpow.pop %v948
        %v950 = vmul.f32 %v859, 1.442695
        %v951 = vpow.pop %v950
        %v952 = vmul.f32 %v860, 1.442695
        %v953 = vpow.pop %v952
        %v954 = vmul.f32 %v861, 1.442695
        %v955 = vpow.pop %v954
        %v956 = vmul.f32 %v862, 1.442695
        %v957 = vpow.pop %v956
        %v958 = vmul.f32 %v863, 1.442695
        %v959 = vpow.pop %v958
        %v960 = vmul.f32 %v864, 1.442695
        %v961 = vpow.pop %v960
        %v962 = vmul.f32 %v865, 1.442695
        %v963 = vpow.pop %v962
        %v964 = vmul.f32 %v866, 1.442695
        %v965 = vpow.pop %v964
        %v966 = vmul.f32 %v867, 1.442695
        %v967 = vpow.pop %v966
        %v968 = vmul.f32 %v868, 1.442695
        %v969 = vpow.pop %v968
        %v970 = vmul.f32 %v869, 1.442695
        %v971 = vpow.pop %v970
        %v972 = vmul.f32 %v870, 1.442695
        %v973 = vpow.pop %v972
        %v974 = vmul.f32 %v871, 1.442695
        %v975 = vpow.pop %v974
        %v976 = vmul.f32 %v872, 1.442695
        %v977 = vpow.pop %v976
        %v978 = vmul.f32 %v873, 1.442695
        %v979 = vpow.pop %v978
        %v980 = vmul.f32 %v874, 1.442695
        %v981 = vpow.pop %v980
        %v982 = vmul.f32 %v875, 1.442695
        %v983 = vpow.pop %v982
        %v984 = vmul.f32 %v876, 1.442695
        %v985 = vpow.pop %v984
        %v986 = vmul.f32 %v877, 1.442695
        %v987 = vpow.pop %v986
        %v988 = vmul.f32 %v878, 1.442695
        %v989 = vpow.pop %v988
        %v990 = vmul.f32 %v879, 1.442695
        %v991 = vpow.pop %v990
        %v992 = vmul.f32 %v880, 1.442695
        %v993 = vpow.pop %v992
        %v994 = vmul.f32 %v881, 1.442695
        %v995 = vpow.pop %v994
        %v996 = vmul.f32 %v882, 1.442695
        %v997 = vpow.pop %v996
        %v998 = vmul.f32 %v883, 1.442695
        %v999 = vpow.pop %v998
        %v1000 = vmul.f32 %v884, 1.442695
        %v1001 = vpow.pop %v1000
        %v1002 = vmul.f32 %v885, 1.442695
        %v1003 = vpow.pop %v1002
        %v1004 = vmul.f32 %v886, 1.442695
        %v1005 = vpow.pop %v1004
        %v1006 = vmul.f32 %v887, 1.442695
        %v1007 = vpow.pop %v1006
        %v1008 = vmul.f32 %v888, 1.442695
        %v1009 = vpow.pop %v1008
        %v1010 = vmul.f32 %v889, 1.442695
        %v1011 = vpow.pop %v1010
        %v1012 = vmul.f32 %v890, 1.442695
        %v1013 = vpow.pop %v1012
        %v1014 = vmul.f32 %v891, 1.442695
        %v1015 = vpow.pop %v1014
        %v1016 = vmul.f32 %v892, 1.442695
        %v1017 = vpow.pop %v1016
        %v1018 = vmul.f32 %v893, 1.442695
        %v1019 = vpow.pop %v1018
        %v1020 = vmul.f32 %v894, 1.442695
        %v1021 = vpow.pop %v1020
        %v1022 = vmul.f32 %v895, 1.442695
        %v1023 = vpow.pop %v1022
        %v1024 = vpack.c.bf16 %v901, %v897
        %v1025 = vpack.c.bf16 %v903, %v899
        %v1026 = vpack.c.bf16 %v909, %v905
        %v1027 = vpack.c.bf16 %v911, %v907
        %v1028 = vpack.c.bf16 %v917, %v913
        %v1029 = vpack.c.bf16 %v919, %v915
        %v1030 = vpack.c.bf16 %v925, %v921
        %v1031 = vpack.c.bf16 %v927, %v923
        %v1032 = vpack.c.bf16 %v933, %v929
        %v1033 = vpack.c.bf16 %v935, %v931
        %v1034 = vpack.c.bf16 %v941, %v937
        %v1035 = vpack.c.bf16 %v943, %v939
        %v1036 = vpack.c.bf16 %v949, %v945
        %v1037 = vpack.c.bf16 %v951, %v947
        %v1038 = vpack.c.bf16 %v957, %v953
        %v1039 = vpack.c.bf16 %v959, %v955
        %v1040 = vpack.c.bf16 %v965, %v961
        %v1041 = vpack.c.bf16 %v967, %v963
        %v1042 = vpack.c.bf16 %v973, %v969
        %v1043 = vpack.c.bf16 %v975, %v971
        %v1044 = vpack.c.bf16 %v981, %v977
        %v1045 = vpack.c.bf16 %v983, %v979
        %v1046 = vpack.c.bf16 %v989, %v985
        %v1047 = vpack.c.bf16 %v991, %v987
        %v1048 = vpack.c.bf16 %v997, %v993
        %v1049 = vpack.c.bf16 %v999, %v995
        %v1050 = vpack.c.bf16 %v1005, %v1001
        %v1051 = vpack.c.bf16 %v1007, %v1003
        %v1052 = vpack.c.bf16 %v1013, %v1009
        %v1053 = vpack.c.bf16 %v1015, %v1011
        %v1054 = vpack.c.bf16 %v1021, %v1017
        %v1055 = vpack.c.bf16 %v1023, %v1019
        %v1056 = vpack.c.bf16 %v307, %v301
        %v1057 = vpack.c.bf16 %v309, %v303
        %v1058 = vpack.c.bf16 %v313, %v313
        %v1059 = vpack.c.bf16 %v315, %v315
        %1060 = vmatprep.subr.bf16.mxu0 %v1025
        %1061 = vmatpush1.bf16.msra.mxu0 %v1024
        %1062 = vmatprep.subr.bf16.mxu0 %v1027
        %1063 = vmatpush1.bf16.msra.mxu0 %v1026
        %1064 = vmatprep.subr.bf16.mxu0 %v1029
        %1065 = vmatpush1.bf16.msra.mxu0 %v1028
        %1066 = vmatprep.subr.bf16.mxu0 %v1031
        %1067 = vmatpush1.bf16.msra.mxu0 %v1030
        %1068 = vmatprep.subr.bf16.mxu0 %v1033
        %1069 = vmatpush1.bf16.msra.mxu0 %v1032
        %1070 = vmatprep.subr.bf16.mxu0 %v1035
        %1071 = vmatpush1.bf16.msra.mxu0 %v1034
        %1072 = vmatprep.subr.bf16.mxu0 %v1037
        %1073 = vmatpush1.bf16.msra.mxu0 %v1036
        %1074 = vmatprep.subr.bf16.mxu0 %v1039
        %1075 = vmatpush1.bf16.msra.mxu0 %v1038
        %1076 = vmatprep.subr.bf16.mxu0 %v1041
        %1077 = vmatpush1.bf16.msra.mxu0 %v1040
        %1078 = vmatprep.subr.bf16.mxu0 %v1043
        %1079 = vmatpush1.bf16.msra.mxu0 %v1042
        %1080 = vmatprep.subr.bf16.mxu0 %v1045
        %1081 = vmatpush1.bf16.msra.mxu0 %v1044
        %1082 = vmatprep.subr.bf16.mxu0 %v1047
        %1083 = vmatpush1.bf16.msra.mxu0 %v1046
        %1084 = vmatprep.subr.bf16.mxu0 %v1049
        %1085 = vmatpush1.bf16.msra.mxu0 %v1048
        %1086 = vmatprep.subr.bf16.mxu0 %v1051
        %1087 = vmatpush1.bf16.msra.mxu0 %v1050
        %1088 = vmatprep.subr.bf16.mxu0 %v1053
        %1089 = vmatpush1.bf16.msra.mxu0 %v1052
        %1090 = vmatprep.subr.bf16.mxu0 %v1055
        %1091 = vmatpush1.bf16.msra.mxu0 %v1054
        %1092 = vmatprep.mubr.bf16.mxu0 %v1057
        %1093 = vmatmul.mubr.bf16.gmra.mrb[0].mxu0 %v1056
        %v1094 = vpop.f32.mrb[0].mxu0
        %v1095 = vadd.f32 0.0, %v1094
        %v1096 = vpop.f32.mrb[0].mxu0
        %v1097 = vadd.f32 0.0, %v1096
        %v1098 = vpop.f32.mrb[0].mxu0
        %v1099 = vadd.f32 0.0, %v1098
        %v1100 = vpop.f32.mrb[0].mxu0
        %v1101 = vadd.f32 0.0, %v1100
        %1102 = vmatprep.mubr.bf16.mxu0 %v1059
        %1103 = vmatmul.mubr.bf16.gmra.mrb[0].mxu0 %v1058
        %v1104 = vpop.f32.mrb[0].mxu0
        %v1105 = vadd.f32 0.0, %v1104
        %v1106 = vpop.f32.mrb[0].mxu0
        %v1107 = vadd.f32 0.0, %v1106
        %v1108 = vpop.f32.mrb[0].mxu0
        %v1109 = vpop.f32.mrb[0].mxu0
        %1110 = vdwg.mxu0
        %v1111 = vrcp.pop %v1105
        %v1112 = vrcp.pop %v1107
        %v1113 = vmul.f32 %v1105, %v1111
        %v1114 = vmul.f32 %v1107, %v1112
        %v1115 = vsub.f32 2.0, %v1113
        %v1116 = vsub.f32 2.0, %v1114
        %v1117 = vmul.f32 %v1111, %v1115
        %v1118 = vmul.f32 %v1112, %v1116
        %s1119 = sld [smem:[#allocation2]]
        %v1120 = vlaneseq
        %v1121 = vshrl.u32 %v1120, 7
        %v1122 = vsub.s32 0, %v1121
        %v1123 = vrot.slane %v1117, %v1122
        %v1124 = vlaneseq
        %v1125 = vshrl.u32 %v1124, 7
        %v1126 = vsub.s32 0, %v1125
        %v1127 = vrot.slane %v1118, %v1126
        %v1128 = vmul.f32 %v1095, %v1123
        %v1129 = vmul.f32 %v1097, %v1127
        %v1130 = vmul.f32 %v1099, %v1123
        %v1131 = vmul.f32 %v1101, %v1127
        %v1132 = vstv %s1119
        %v1133 = vmul.f32 %v1132, %v1128
        %v1134 = vmul.f32 %v1132, %v1129
        %v1135 = vmul.f32 %v1132, %v1130
        %v1136 = vmul.f32 %v1132, %v1131
        %v1137 = vadd.f32 %v1133, %v196
        %v1138 = vadd.f32 %v1134, %v197
        %v1139 = vadd.f32 %v1135, %v198
        %v1140 = vadd.f32 %v1136, %v199
        %1141 = vst [vmem:[%s178] sm:$0xff] %v1137
        %1142 = vst [vmem:[%s178 + $0x8] sm:$0xff] %v1138
        %1143 = vst [vmem:[%s178 + $0x10] sm:$0xff] %v1139
        %1144 = vst [vmem:[%s178 + $0x18] sm:$0xff] %v1140
        %s1145 = sand.u32 %s108, 1
        %s1146 = scalar_lea.sflag [#allocation4], %s1145
        %s1147 = sand.u32 %s108, 1
        %s1148 = smul.addr %s1147, 32
        %s1149 = scalar_lea.vmem [#allocation3], %s1148
        // Predicated region
        $region33: #{tpu_custom_call.1} parent=31 // pred_check
          %p1150 = pneg %p118
        $region34: #{tpu_custom_call.1} parent=31 // pred_check_branch
          %1152 = sbr.rel (%p1150) target = $region36
        $region35: #{tpu_custom_call.1} parent=31 // pred_region
          %s1153 = smul.u32 2, %s23
          %s1155 = ssub.s32 512, 512
          %1156 = vsyncadd %s1146, %s1155
          %s1157 = smul.addr %s22, 4
          %s1158 = sadd.s32 %s1153, %s1157
          %s1159 = smul.addr %s1158, 128
          %s1160 = scalar_lea.hbm %s3, %s1159
          %s1161 = sshll.u32 %s1149, 4
          %s1162 = int_to_ptr.vmem [resolvable:$true] %s1161
          %1167 = dma.vmem_to_hbm [thread:$0]  %s1162, 512, %s1160, %s1146, 256, 256, 16
        $region36: #{tpu_custom_call.1} parent=31 // pred_fallthru
          _
      $region32: #{tpu_custom_call.1} parent=5 // pred_fallthru
        _
      %p1168 = scmp.le.s32.totalorder 2, %s13
      // Predicated region
      $region37: #{tpu_custom_call.1} parent=5 // pred_check
        %p1169 = pneg %p1168
      $region38: #{tpu_custom_call.1} parent=5 // pred_check_branch
        %1171 = sbr.rel (%p1169) target = $region40
      $region39: #{tpu_custom_call.1} parent=5 // pred_region
        %s1172 = ssub.s32 %s13, 2
        // Predicated region
        $region41: #{tpu_custom_call.1} parent=39 // pred_check
          %p1173 = pneg %p124
        $region42: #{tpu_custom_call.1} parent=39 // pred_check_branch
          %1175 = sbr.rel (%p1173) target = $region44
        $region43: #{tpu_custom_call.1} parent=39 // pred_region
          %s1176 = sand.u32 %s109, 1
          %s1177 = scalar_lea.sflag [#allocation4], %s1176
          %s1178 = sand.u32 %s109, 1
          %s1179 = smul.addr %s1178, 32
          %s1180 = scalar_lea.vmem [#allocation3], %s1179
          %1181 = dma.done %s1177, 512
        $region44: #{tpu_custom_call.1} parent=39 // pred_fallthru
          _
      $region40: #{tpu_custom_call.1} parent=5 // pred_fallthru
        _
    $region6: #{tpu_custom_call.1} parent=1 // loop_footer
      %s17 = sadd.s32 1, %s13
    $region7: #{tpu_custom_call.1} parent=1 // loop_footer_branch
      %12 = sbr.rel target = $region3
    $region8: #{tpu_custom_call.1} parent=1 // loop_exit
      _
    %1182 = vsyncpa [#allocation4], 1
    %s1183 = scalar_lea.sflag [#allocation4], 1
    %1184 = vsyncpa %s1183, 1

</llo_original>
